<compile_context>
chip_gen: v6e
topology: v6e:2x2x1
jax: 0.10.0
libtpu: 0.0.40
codegen_flags: <defaults>
</compile_context>

<pallas_src>
import functools
import re

import jax
import jax.numpy as jnp
from jax.experimental import pallas as pl
from jax.experimental.pallas import tpu as pltpu


def _sublane_multiple(dtype) -> int:
    # 8 for f32, 16 for bf16, 32 for int8/fp8 (sub-32-bit packs along sublanes).
    itemsize = jnp.dtype(dtype).itemsize
    return max(8, 32 // itemsize)


@functools.lru_cache(maxsize=None)
def _tpu_generation() -> int:
    """Best-effort TPU generation (5, 6, 7, ...); 0 if unknown."""
    try:
        kind = str(jax.devices()[0].device_kind).lower()
    except Exception:
        return 0
    m = re.search(r"v(\d+)", kind)
    return int(m.group(1)) if m else 0


@functools.lru_cache(maxsize=None)
def _chip_config():
    """(target_block_bytes, vmem_limit_bytes, min_grid_steps, even_steps, native_bf16)."""
    gen = _tpu_generation()
    if gen >= 7:
        # 2 TCs/chip, 64 MiB VMEM/TC, ~3.2 TB/s HBM: big blocks (4 x 10 MiB
        # double-buffered copies = 40 MiB < 48 MiB limit) + even step count.
        return (10 << 20, 48 << 20, 8, True, True)
    if gen == 6:
        # 1 TC, 128 MiB VMEM, ~1.4 TB/s: 8 MiB blocks already sit near roofline.
        return (8 << 20, 48 << 20, 2, False, True)
    # v5e and unknown chips: conservative 4 MiB blocks, f32 math (no bf16 VPU/EUP).
    return (4 << 20, 32 << 20, 2, False, False)


def _choose_width(n: int) -> int:
    # Largest lane-dense width (multiple of 128 -> unmasked vst) that divides n,
    # so the pad/slice fallback is almost never taken.
    for w in (512, 256, 128):
        if n % w == 0:
            return w
    return 128


def _choose_tile_rows(rows, itemsize, sub, width, target_block_bytes,
                      min_steps, even_steps):
    # Largest sublane-aligned tile whose block is ~target_block_bytes.
    tr_cap = max(sub, (target_block_bytes // (width * itemsize)) // sub * sub)
    steps = max(1, -(-rows // tr_cap))
    # Keep enough steps to fill the double-buffer pipeline (and both v7x TCs),
    # but only when each step still gets a reasonable amount of work.
    if rows > sub * min_steps:
        steps = max(steps, min_steps)
    if even_steps and steps > 1 and steps % 2:
        steps += 1
    tr = -(-rows // steps)           # ceil(rows / steps)
    tr = -(-tr // sub) * sub         # round up to sublane multiple
    tr = min(tr, rows)
    if even_steps:
        # Rounding to the sublane multiple can change the step count; make a
        # best-effort pass so both v7x TensorCores get the same block count.
        for cand in (tr, tr + sub, max(sub, tr - sub), tr + 2 * sub):
            if cand <= rows and (-(-rows // cand)) % 2 == 0:
                tr = cand
                break
    return tr


def _make_swish_kernel(beta: float, compute_dtype):
    # beta baked as a closure constant (module default: trainable=False, beta=1.0).
    beta = float(beta)

    def kernel(x_ref, o_ref):
        x = x_ref[...].astype(compute_dtype)
        # sigmoid's exp lands on the otherwise-idle EUP slot; kernel is DMA-bound.
        o_ref[...] = (x * jax.nn.sigmoid(x * beta)).astype(o_ref.dtype)

    return kernel


@functools.partial(jax.jit, static_argnames=("beta",))
def swish(x: jax.Array, beta: float = 1.0) -> jax.Array:
    """Pallas implementation of SWISH.forward: x * sigmoid(beta * x)."""
    # TODO(synk): trainable beta (nn.Parameter) would need an SMEM scalar input
    # rather than a static closure constant; the module default
    # (trainable=False, beta=1.0) is fully covered by this path.
    orig_shape = x.shape
    orig_dtype = x.dtype
    itemsize = jnp.dtype(orig_dtype).itemsize
    sub = _sublane_multiple(orig_dtype)
    target_block_bytes, vmem_limit, min_steps, even_steps, native_bf16 = _chip_config()

    # Native bf16 on v6e/v7x halves vreg pressure; keep f32 math elsewhere.
    compute_dtype = (orig_dtype
                     if (native_bf16 and orig_dtype == jnp.bfloat16)
                     else jnp.float32)

    n = x.size
    width = _choose_width(n)
    x_flat = jnp.ravel(x)
    n_pad = -(-n // width) * width
    if n_pad != n:
        # Rare fallback (n not a multiple of 128): one extra HBM pass for the
        # pad plus a tail slice; the adaptive width above avoids this for
        # typical NCHW activation sizes.
        x_flat = jnp.pad(x_flat, (0, n_pad - n))
    rows = n_pad // width
    x2d = x_flat.reshape(rows, width)

    tr = _choose_tile_rows(rows, itemsize, sub, width, target_block_bytes,
                           min_steps, even_steps)
    grid = (pl.cdiv(rows, tr),)  # partial edge block (if any) is masked on store

    # NOTE: input_output_aliases={0: 0} halves peak HBM residency when the
    # caller donates x; omitted here because x stays live for the check below.
    out2d = pl.pallas_call(
        _make_swish_kernel(beta, compute_dtype),
        out_shape=jax.ShapeDtypeStruct((rows, width), orig_dtype),
        grid=grid,
        in_specs=[pl.BlockSpec((tr, width), lambda i: (i, 0))],
        out_specs=pl.BlockSpec((tr, width), lambda i: (i, 0)),
        compiler_params=pltpu.CompilerParams(
            dimension_semantics=("parallel",),
            vmem_limit_bytes=vmem_limit,
        ),
        cost_estimate=pl.CostEstimate(
            flops=4 * n_pad,
            transcendentals=n_pad,
            bytes_accessed=2 * n_pad * itemsize,
        ),
    )(x2d)

    out_flat = out2d.reshape(-1)
    if n_pad != n:
        out_flat = out_flat[:n]
    return out_flat.reshape(orig_shape)


if __name__ == "__main__":
    key = jax.random.PRNGKey(0)
    # Small NCHW-shaped input consistent with typical conv-activation usage.
    x = jax.random.normal(key, (2, 4, 16, 16), dtype=jnp.float32)

    beta = 1.0  # SWISH(trainable=False) -> beta fixed at 1.0
    y = swish(x, beta=beta)
    jax.block_until_ready(y)

    # Reference check against plain JAX.
    y_ref = x * jax.nn.sigmoid(x * beta)
    assert y.shape == x.shape and y.dtype == x.dtype
    assert jnp.allclose(y, y_ref, atol=1e-6, rtol=1e-6), "mismatch vs reference"

    print("KERNEL_OK")
</pallas_src>

<mosaic_0001>
module attributes {stable_mosaic.version = 11 : i64} {
  func.func @kernel(%arg0: i32, %arg1: memref<4x512xf32, #tpu.memory_space<vmem>>, %arg2: memref<4x512xf32, #tpu.memory_space<vmem>>) attributes {dimension_semantics = [#tpu.dimension_semantics<parallel>], iteration_bounds = array<i64: 1>, scalar_prefetch = 0 : i64, scratch_operands = 0 : i64, tpu.core_type = #tpu.core_type<tc>, window_params = [{transform_indices = @transform_0, window_bounds = array<i64: 4, 512>}, {transform_indices = @transform_1, window_bounds = array<i64: 4, 512>}]} {
    %c0 = arith.constant 0 : index
    %c0_0 = arith.constant 0 : index
    %0 = vector.load %arg1[%c0, %c0_0] : memref<4x512xf32, #tpu.memory_space<vmem>>, vector<4x512xf32>
    %cst = arith.constant 1.000000e+00 : f32
    %1 = vector.broadcast %cst : f32 to vector<4x512xf32>
    %2 = arith.mulf %0, %1 : vector<4x512xf32>
    %3 = arith.negf %2 : vector<4x512xf32>
    %4 = math.exp %3 : vector<4x512xf32>
    %cst_1 = arith.constant 1.000000e+00 : f32
    %5 = vector.broadcast %cst_1 : f32 to vector<4x512xf32>
    %6 = arith.addf %5, %4 : vector<4x512xf32>
    %7 = arith.divf %5, %6 : vector<4x512xf32>
    %8 = arith.mulf %0, %7 : vector<4x512xf32>
    %c0_2 = arith.constant 0 : index
    %c0_3 = arith.constant 0 : index
    %9 = vector.load %arg2[%c0_2, %c0_3] : memref<4x512xf32, #tpu.memory_space<vmem>>, vector<4x512xf32>
    tpu.vector_store %arg2[%c0_2, %c0_3], %8 {strides = array<i32>} : memref<4x512xf32, #tpu.memory_space<vmem>>, vector<4x512xf32>,
    return
  }
  func.func @transform_0(%arg0: i32) -> (i32, i32) {
    %c0_i32 = arith.constant 0 : i32
    %c0_i32_0 = arith.constant 0 : i32
    return %arg0, %c0_i32 : i32, i32
  }
  func.func @transform_1(%arg0: i32) -> (i32, i32) {
    %c0_i32 = arith.constant 0 : i32
    %c0_i32_0 = arith.constant 0 : i32
    return %arg0, %c0_i32 : i32, i32
  }
}

</mosaic_0001>

<llo_original>
// kernel: swish.1
$region0: #{swish.1}
  #allocation0 [shape = 'u32[]', space=smem, size = 0x4, offset = 0x4, fixed_abs, tag = 'smem constant byte address 0x4 - core index']
  #allocation1 [shape = 'u32[144,128]{1,0:T(1,128)}', space=vmem, size = 0x12000, scoped, tag = 'internal scratch']
  %s0 = inlined_call_operand.vmem [shape: f32[4,512], index: 0, kind: input, shape index: {}]
  %s1 = inlined_call_operand.vmem [shape: f32[4,512], index: 1, kind: output, shape index: {}]
  %s2 = sld [smem:[#allocation0]]
  $region14: #{swish.1} parent=0
    _
  %s4 = ssub.s32 1, %s2
  %s5 = scalar_select 0, %s4, %s2
  // Predicated region
  $region2: #{swish.1} parent=0 // pred_check
    _
  $region3: #{swish.1} parent=0 // pred_check_branch
    %7 = sbr.rel (0) target = $region5
  $region4: #{swish.1} parent=0 // pred_region
    _
  $region5: #{swish.1} parent=0 // pred_fallthru
    _
  %v8 = vld [vmem:[%s0] sm:$0xff]
  %v9 = vld [vmem:[%s0 + $0x8] sm:$0xff]
  %v10 = vxor.u32 %v8, 2147483648
  %v11 = vxor.u32 %v9, 2147483648
  %v12 = vmul.f32 %v10, 1.442695
  %v13 = vpow.pop %v12
  %v14 = vmul.f32 %v11, 1.442695
  %v15 = vpow.pop %v14
  %v16 = vadd.f32 %v13, 1.0
  %v17 = vadd.f32 %v15, 1.0
  %v18 = vrcp.pop %v16
  %v19 = vmul.f32 1.0, %v18
  %v20 = vrcp.pop %v17
  %v21 = vmul.f32 1.0, %v20
  %v22 = vmul.f32 %v8, %v19
  %v23 = vmul.f32 %v9, %v21
  %24 = vst [vmem:[%s1] sm:$0xff] %v22
  %25 = vst [vmem:[%s1 + $0x8] sm:$0xff] %v23
  // Predicated region
  $region6: #{swish.1} parent=0 // pred_check
    _
  $region7: #{swish.1} parent=0 // pred_check_branch
    %27 = sbr.rel (0) target = $region9
  $region8: #{swish.1} parent=0 // pred_region
    _
  $region9: #{swish.1} parent=0 // pred_fallthru
    _
  // Predicated region
  $region10: #{swish.1} parent=0 // pred_check
    _
  $region11: #{swish.1} parent=0 // pred_check_branch
    %29 = sbr.rel (0) target = $region13
  $region12: #{swish.1} parent=0 // pred_region
    _
  $region13: #{swish.1} parent=0 // pred_fallthru
    _

</llo_original>
